<compile_context>
chip_gen: v5e
topology: v5e:2x2
jax: 0.10.0
libtpu: 0.0.40
codegen_flags: <defaults>
</compile_context>

<pallas_src>
import functools

import jax
import jax.numpy as jnp
from jax.experimental import pallas as pl
from jax.experimental.pallas import tpu as pltpu


# ----------------------------------------------------------------------------
# Kernel bodies
# ----------------------------------------------------------------------------
def _conv_gn_silu(taps, w, b, g, beta, eps):
    """Fused conv-as-matmul -> GroupNorm(1 group) -> SiLU for one sample.

    taps : (K, HW)   bf16  im2col tap slab (spatial on the lane axis)
    w    : (Cout, K) bf16  flattened conv weight (pre-transposed in the wrapper)
    b, g, beta : (Cout, 1) f32
    returns (Cout, HW) f32
    """
    # MXU: bf16 x bf16 -> f32 accumulate.
    h = jnp.dot(w, taps, preferred_element_type=jnp.float32) + b
    # GroupNorm with a single group == normalize over the whole (C, H*W) slab.
    mu = jnp.mean(h, keepdims=True)
    var = jnp.mean(jnp.square(h - mu), keepdims=True)
    h = (h - mu) * jax.lax.rsqrt(var + eps) * g + beta
    # SiLU in f32 (exp on the EUP).
    return h * (1.0 / (1.0 + jnp.exp(-h)))


def _block1_kernel(xt_ref, w_ref, b_ref, g_ref, beta_ref, o_ref, *, eps):
    o_ref[0] = _conv_gn_silu(
        xt_ref[0], w_ref[...], b_ref[...], g_ref[...], beta_ref[...], eps
    ).astype(o_ref.dtype)


def _block2_proj_kernel(ht_ref, x_ref, w_ref, b_ref, g_ref, beta_ref,
                        ws_ref, bs_ref, o_ref, *, eps):
    h = _conv_gn_silu(ht_ref[0], w_ref[...], b_ref[...], g_ref[...], beta_ref[...], eps)
    # 1x1-conv shortcut (dim != dim_out): (Cout, Cin) @ (Cin, HW) + bias.
    shortcut = jnp.dot(ws_ref[...], x_ref[0],
                       preferred_element_type=jnp.float32) + bs_ref[...]
    o_ref[0] = (h + shortcut).astype(o_ref.dtype)


def _block2_id_kernel(ht_ref, x_ref, w_ref, b_ref, g_ref, beta_ref, o_ref, *, eps):
    h = _conv_gn_silu(ht_ref[0], w_ref[...], b_ref[...], g_ref[...], beta_ref[...], eps)
    o_ref[0] = (h + x_ref[0]).astype(o_ref.dtype)   # identity shortcut (dim == dim_out)


# ----------------------------------------------------------------------------
# Wrapper (layout plumbing + pallas_call plumbing)
# ----------------------------------------------------------------------------
def _im2col_3x3(x_nchw):
    """(B, C, H, W) -> (B, 9*C, H*W): zero-padded 3x3 tap slab (layout only)."""
    B, C, H, W = x_nchw.shape
    xp = jnp.pad(x_nchw, ((0, 0), (0, 0), (1, 1), (1, 1)))
    taps = [xp[:, :, dy:dy + H, dx:dx + W].reshape(B, C, H * W)
            for dy in range(3) for dx in range(3)]
    return jnp.concatenate(taps, axis=1)


def _conv3x3_weight_to_mat(w):
    """PyTorch (Cout, Cin, 3, 3) -> (Cout, 9*Cin) bf16, matching _im2col_3x3 order."""
    Cout, Cin = w.shape[0], w.shape[1]
    return jnp.transpose(w, (0, 2, 3, 1)).reshape(Cout, 9 * Cin).astype(jnp.bfloat16)


def resnet_block_forward(x, params, *, eps=1e-5):
    """Pallas ResnetBlock forward: x (B, Cin, H, W) f32 -> (B, Cout, H, W) f32."""
    B, Cin, H, W = x.shape
    HW = H * W
    Cout = params["w1"].shape[0]
    has_proj = params.get("ws", None) is not None
    if not has_proj:
        assert Cin == Cout, "identity shortcut requires dim == dim_out"

    # ---- layout plumbing, done once outside the kernels ----
    x_taps = _im2col_3x3(x).astype(jnp.bfloat16)              # (B, 9*Cin, HW)
    w1m = _conv3x3_weight_to_mat(params["w1"])                # (Cout, 9*Cin) bf16
    w2m = _conv3x3_weight_to_mat(params["w2"])                # (Cout, 9*Cout) bf16
    b1 = params["b1"].reshape(Cout, 1).astype(jnp.float32)
    g1 = params["g1"].reshape(Cout, 1).astype(jnp.float32)
    be1 = params["beta1"].reshape(Cout, 1).astype(jnp.float32)
    b2 = params["b2"].reshape(Cout, 1).astype(jnp.float32)
    g2 = params["g2"].reshape(Cout, 1).astype(jnp.float32)
    be2 = params["beta2"].reshape(Cout, 1).astype(jnp.float32)

    cparams = pltpu.CompilerParams(dimension_semantics=("parallel",))
    col = lambda b: (b, 0, 0)     # one full sample slab per grid step
    rep = lambda b: (0, 0)        # resident weights / per-channel params
    k1, k2 = 9 * Cin, 9 * Cout

    # ---- stage 1: Conv3x3 -> GroupNorm(1) -> SiLU ----
    h1 = pl.pallas_call(
        functools.partial(_block1_kernel, eps=eps),
        out_shape=jax.ShapeDtypeStruct((B, Cout, HW), jnp.bfloat16),
        grid_spec=pltpu.PrefetchScalarGridSpec(
            num_scalar_prefetch=0,
            grid=(B,),
            in_specs=[
                pl.BlockSpec((1, k1, HW), col),
                pl.BlockSpec((Cout, k1), rep),
                pl.BlockSpec((Cout, 1), rep),
                pl.BlockSpec((Cout, 1), rep),
                pl.BlockSpec((Cout, 1), rep),
            ],
            out_specs=pl.BlockSpec((1, Cout, HW), col),
        ),
        compiler_params=cparams,
        cost_estimate=pl.CostEstimate(
            flops=2 * B * Cout * k1 * HW,
            transcendentals=B * Cout * HW,
            bytes_accessed=2 * (B * k1 * HW + Cout * k1 + B * Cout * HW) + 4 * 3 * Cout,
        ),
    )(x_taps, w1m, b1, g1, be1)

    # ---- stage 2: Conv3x3 -> GroupNorm(1) -> SiLU, plus residual shortcut ----
    h_taps = _im2col_3x3(h1.reshape(B, Cout, H, W))           # (B, 9*Cout, HW) bf16
    x_slab = x.reshape(B, Cin, HW)

    if has_proj:
        ws = params["ws"].reshape(Cout, Cin).astype(jnp.bfloat16)
        bs = params["bs"].reshape(Cout, 1).astype(jnp.float32)
        out = pl.pallas_call(
            functools.partial(_block2_proj_kernel, eps=eps),
            out_shape=jax.ShapeDtypeStruct((B, Cout, HW), jnp.float32),
            grid_spec=pltpu.PrefetchScalarGridSpec(
                num_scalar_prefetch=0,
                grid=(B,),
                in_specs=[
                    pl.BlockSpec((1, k2, HW), col),
                    pl.BlockSpec((1, Cin, HW), col),
                    pl.BlockSpec((Cout, k2), rep),
                    pl.BlockSpec((Cout, 1), rep),
                    pl.BlockSpec((Cout, 1), rep),
                    pl.BlockSpec((Cout, 1), rep),
                    pl.BlockSpec((Cout, Cin), rep),
                    pl.BlockSpec((Cout, 1), rep),
                ],
                out_specs=pl.BlockSpec((1, Cout, HW), col),
            ),
            compiler_params=cparams,
            cost_estimate=pl.CostEstimate(
                flops=2 * B * Cout * (k2 + Cin) * HW,
                transcendentals=B * Cout * HW,
                bytes_accessed=2 * (B * k2 * HW + B * Cin * HW + Cout * (k2 + Cin))
                               + 4 * (B * Cout * HW + 4 * Cout),
            ),
        )(h_taps, x_slab.astype(jnp.bfloat16), w2m, b2, g2, be2, ws, bs)
    else:
        out = pl.pallas_call(
            functools.partial(_block2_id_kernel, eps=eps),
            out_shape=jax.ShapeDtypeStruct((B, Cout, HW), jnp.float32),
            grid_spec=pltpu.PrefetchScalarGridSpec(
                num_scalar_prefetch=0,
                grid=(B,),
                in_specs=[
                    pl.BlockSpec((1, k2, HW), col),
                    pl.BlockSpec((1, Cout, HW), col),
                    pl.BlockSpec((Cout, k2), rep),
                    pl.BlockSpec((Cout, 1), rep),
                    pl.BlockSpec((Cout, 1), rep),
                    pl.BlockSpec((Cout, 1), rep),
                ],
                out_specs=pl.BlockSpec((1, Cout, HW), col),
            ),
            compiler_params=cparams,
            cost_estimate=pl.CostEstimate(
                flops=2 * B * Cout * k2 * HW,
                transcendentals=B * Cout * HW,
                bytes_accessed=2 * (B * k2 * HW + Cout * k2)
                               + 4 * (2 * B * Cout * HW + 3 * Cout),
            ),
        )(h_taps, x_slab, w2m, b2, g2, be2)

    return out.reshape(B, Cout, H, W)


# ----------------------------------------------------------------------------
# Pure-JAX f32 reference reproducing the PyTorch forward exactly
# ----------------------------------------------------------------------------
def resnet_block_reference(x, params, eps=1e-5):
    def conv(v, w, b, pad):
        y = jax.lax.conv_general_dilated(
            v, w, window_strides=(1, 1), padding=[(pad, pad), (pad, pad)],
            dimension_numbers=("NCHW", "OIHW", "NCHW"))
        return y + b[None, :, None, None]

    def groupnorm1(v, g, beta):
        mu = jnp.mean(v, axis=(1, 2, 3), keepdims=True)
        var = jnp.mean(jnp.square(v - mu), axis=(1, 2, 3), keepdims=True)
        return (v - mu) * jax.lax.rsqrt(var + eps) * g[None, :, None, None] \
            + beta[None, :, None, None]

    def silu(v):
        return v * (1.0 / (1.0 + jnp.exp(-v)))

    h = silu(groupnorm1(conv(x, params["w1"], params["b1"], 1),
                        params["g1"], params["beta1"]))
    h = silu(groupnorm1(conv(h, params["w2"], params["b2"], 1),
                        params["g2"], params["beta2"]))
    if params.get("ws", None) is not None:
        res = conv(x, params["ws"], params["bs"], 0)
    else:
        res = x
    return h + res


if __name__ == "__main__":
    key = jax.random.PRNGKey(0)
    ks = jax.random.split(key, 11)

    # ResnetBlock(dim=4, dim_out=8) on a (2, 4, 16, 16) NCHW input, no time_emb.
    B, Cin, Cout, H, W = 2, 4, 8, 16, 16
    x = jax.random.normal(ks[0], (B, Cin, H, W), dtype=jnp.float32)

    def uinit(k, shape, fan_in):
        bound = 1.0 / (fan_in ** 0.5)
        return jax.random.uniform(k, shape, minval=-bound, maxval=bound,
                                  dtype=jnp.float32)

    params = {
        # block1: Conv3x3 -> GN(1) -> SiLU -> Conv3x3 -> GN(1) -> SiLU
        "w1": uinit(ks[1], (Cout, Cin, 3, 3), Cin * 9),
        "b1": uinit(ks[2], (Cout,), Cin * 9),
        "g1": 1.0 + 0.1 * jax.random.normal(ks[3], (Cout,), dtype=jnp.float32),
        "beta1": 0.1 * jax.random.normal(ks[4], (Cout,), dtype=jnp.float32),
        "w2": uinit(ks[5], (Cout, Cout, 3, 3), Cout * 9),
        "b2": uinit(ks[6], (Cout,), Cout * 9),
        "g2": 1.0 + 0.1 * jax.random.normal(ks[7], (Cout,), dtype=jnp.float32),
        "beta2": 0.1 * jax.random.normal(ks[8], (Cout,), dtype=jnp.float32),
        # block2: Conv1x1 shortcut because dim != dim_out
        "ws": uinit(ks[9], (Cout, Cin, 1, 1), Cin),
        "bs": uinit(ks[10], (Cout,), Cin),
    }

    out = jax.jit(resnet_block_forward)(x, params)
    out = jax.block_until_ready(out)

    ref = resnet_block_reference(x, params)
    assert out.shape == (B, Cout, H, W)
    # bf16 MXU inputs with f32 accumulation -> small deviation vs. pure-f32 reference.
    err = float(jnp.max(jnp.abs(out - ref)))
    assert jnp.allclose(out, ref, atol=7e-2, rtol=3e-2), f"max abs err {err}"

    print("KERNEL_OK")
</pallas_src>

<mosaic_0001>
module attributes {stable_mosaic.version = 11 : i64} {
  func.func @_block1_kernel(%arg0: i32, %arg1: memref<1x36x256xbf16, #tpu.memory_space<vmem>>, %arg2: memref<8x36xbf16, #tpu.memory_space<vmem>>, %arg3: memref<8x1xf32, #tpu.memory_space<vmem>>, %arg4: memref<8x1xf32, #tpu.memory_space<vmem>>, %arg5: memref<8x1xf32, #tpu.memory_space<vmem>>, %arg6: memref<1x8x256xbf16, #tpu.memory_space<vmem>>) attributes {dimension_semantics = [#tpu.dimension_semantics<parallel>], iteration_bounds = array<i64: 2>, scalar_prefetch = 0 : i64, scratch_operands = 0 : i64, tpu.core_type = #tpu.core_type<tc>, window_params = [{transform_indices = @transform_0, window_bounds = array<i64: 1, 36, 256>}, {pipeline_mode = #tpu.pipeline_mode<synchronous>, transform_indices = @transform_1, window_bounds = array<i64: 8, 36>}, {pipeline_mode = #tpu.pipeline_mode<synchronous>, transform_indices = @transform_2, window_bounds = array<i64: 8, 1>}, {pipeline_mode = #tpu.pipeline_mode<synchronous>, transform_indices = @transform_3, window_bounds = array<i64: 8, 1>}, {pipeline_mode = #tpu.pipeline_mode<synchronous>, transform_indices = @transform_4, window_bounds = array<i64: 8, 1>}, {transform_indices = @transform_5, window_bounds = array<i64: 1, 8, 256>}]} {
    %c0 = arith.constant 0 : index
    %c0_0 = arith.constant 0 : index
    %c0_1 = arith.constant 0 : index
    %0 = vector.load %arg1[%c0, %c0_0, %c0_1] : memref<1x36x256xbf16, #tpu.memory_space<vmem>>, vector<1x36x256xbf16>
    %1 = vector.shape_cast %0 : vector<1x36x256xbf16> to vector<36x256xbf16>
    %c0_2 = arith.constant 0 : index
    %c0_3 = arith.constant 0 : index
    %2 = vector.load %arg2[%c0_2, %c0_3] : memref<8x36xbf16, #tpu.memory_space<vmem>>, vector<8x36xbf16>
    %c0_4 = arith.constant 0 : index
    %c0_5 = arith.constant 0 : index
    %3 = vector.load %arg3[%c0_4, %c0_5] : memref<8x1xf32, #tpu.memory_space<vmem>>, vector<8x1xf32>
    %c0_6 = arith.constant 0 : index
    %c0_7 = arith.constant 0 : index
    %4 = vector.load %arg4[%c0_6, %c0_7] : memref<8x1xf32, #tpu.memory_space<vmem>>, vector<8x1xf32>
    %c0_8 = arith.constant 0 : index
    %c0_9 = arith.constant 0 : index
    %5 = vector.load %arg5[%c0_8, %c0_9] : memref<8x1xf32, #tpu.memory_space<vmem>>, vector<8x1xf32>
    %cst = arith.constant dense<0.000000e+00> : vector<8x256xf32>
    %6 = tpu.matmul %2, %1, %cst {dimension_numbers = #tpu.dot_dimension_numbers<[1], [0], [0], [1], [0, 0, 1, 1], [], []>} : vector<8x36xbf16>, vector<36x256xbf16>, vector<8x256xf32> -> vector<8x256xf32>
    %7 = vector.broadcast %3 : vector<8x1xf32> to vector<8x256xf32>
    %8 = arith.addf %6, %7 : vector<8x256xf32>
    %9 = vector.shape_cast %8 : vector<8x256xf32> to vector<1x8x256xf32>
    %cst_10 = arith.constant dense<0.000000e+00> : vector<1xf32>
    %10 = vector.multi_reduction <add>, %9, %cst_10 [1, 2] : vector<1x8x256xf32> to vector<1xf32>
    %11 = vector.shape_cast %10 : vector<1xf32> to vector<1x1x1xf32>
    %12 = vector.extract %11[0, 0, 0] : f32 from vector<1x1x1xf32>
    %13 = vector.broadcast %12 : f32 to vector<1x1xf32>
    %cst_11 = arith.constant 2.048000e+03 : f32
    %14 = vector.broadcast %cst_11 : f32 to vector<1x1xf32>
    %15 = arith.divf %13, %14 : vector<1x1xf32>
    %16 = vector.broadcast %15 : vector<1x1xf32> to vector<8x256xf32>
    %17 = arith.subf %8, %16 : vector<8x256xf32>
    %18 = arith.mulf %17, %17 : vector<8x256xf32>
    %19 = vector.shape_cast %18 : vector<8x256xf32> to vector<1x8x256xf32>
    %cst_12 = arith.constant dense<0.000000e+00> : vector<1xf32>
    %20 = vector.multi_reduction <add>, %19, %cst_12 [1, 2] : vector<1x8x256xf32> to vector<1xf32>
    %21 = vector.shape_cast %20 : vector<1xf32> to vector<1x1x1xf32>
    %22 = vector.extract %21[0, 0, 0] : f32 from vector<1x1x1xf32>
    %23 = vector.broadcast %22 : f32 to vector<1x1xf32>
    %cst_13 = arith.constant 2.048000e+03 : f32
    %24 = vector.broadcast %cst_13 : f32 to vector<1x1xf32>
    %25 = arith.divf %23, %24 : vector<1x1xf32>
    %26 = vector.broadcast %15 : vector<1x1xf32> to vector<8x256xf32>
    %27 = arith.subf %8, %26 : vector<8x256xf32>
    %cst_14 = arith.constant 9.99999974E-6 : f32
    %28 = vector.broadcast %cst_14 : f32 to vector<1x1xf32>
    %29 = arith.addf %25, %28 : vector<1x1xf32>
    %30 = math.rsqrt %29 : vector<1x1xf32>
    %31 = vector.broadcast %30 : vector<1x1xf32> to vector<8x256xf32>
    %32 = arith.mulf %27, %31 : vector<8x256xf32>
    %33 = vector.broadcast %4 : vector<8x1xf32> to vector<8x256xf32>
    %34 = arith.mulf %32, %33 : vector<8x256xf32>
    %35 = vector.broadcast %5 : vector<8x1xf32> to vector<8x256xf32>
    %36 = arith.addf %34, %35 : vector<8x256xf32>
    %cst_15 = arith.constant 0.000000e+00 : f32
    %37 = vector.broadcast %cst_15 : f32 to vector<8x256xf32>
    %38 = arith.subf %37, %36 : vector<8x256xf32>
    %39 = math.exp %38 : vector<8x256xf32>
    %cst_16 = arith.constant 1.000000e+00 : f32
    %40 = vector.broadcast %cst_16 : f32 to vector<8x256xf32>
    %41 = arith.addf %40, %39 : vector<8x256xf32>
    %cst_17 = arith.constant 1.000000e+00 : f32
    %42 = vector.broadcast %cst_17 : f32 to vector<8x256xf32>
    %43 = arith.divf %42, %41 : vector<8x256xf32>
    %44 = arith.mulf %36, %43 : vector<8x256xf32>
    %45 = arith.truncf %44 : vector<8x256xf32> to vector<8x256xbf16>
    %c0_18 = arith.constant 0 : index
    %c0_19 = arith.constant 0 : index
    %c0_20 = arith.constant 0 : index
    %46 = vector.load %arg6[%c0_18, %c0_19, %c0_20] : memref<1x8x256xbf16, #tpu.memory_space<vmem>>, vector<1x8x256xbf16>
    %47 = vector.shape_cast %46 : vector<1x8x256xbf16> to vector<8x256xbf16>
    %48 = vector.shape_cast %45 : vector<8x256xbf16> to vector<1x8x256xbf16>
    tpu.vector_store %arg6[%c0_18, %c0_19, %c0_20], %48 {strides = array<i32>} : memref<1x8x256xbf16, #tpu.memory_space<vmem>>, vector<1x8x256xbf16>,
    return
  }
  func.func @transform_0(%arg0: i32) -> (i32, i32, i32) {
    %c0_i32 = arith.constant 0 : i32
    %c0_i32_0 = arith.constant 0 : i32
    %c0_i32_1 = arith.constant 0 : i32
    return %arg0, %c0_i32, %c0_i32_0 : i32, i32, i32
  }
  func.func @transform_1(%arg0: i32) -> (i32, i32) {
    %c0_i32 = arith.constant 0 : i32
    %c0_i32_0 = arith.constant 0 : i32
    %c0_i32_1 = arith.constant 0 : i32
    return %c0_i32, %c0_i32_0 : i32, i32
  }
  func.func @transform_2(%arg0: i32) -> (i32, i32) {
    %c0_i32 = arith.constant 0 : i32
    %c0_i32_0 = arith.constant 0 : i32
    %c0_i32_1 = arith.constant 0 : i32
    return %c0_i32, %c0_i32_0 : i32, i32
  }
  func.func @transform_3(%arg0: i32) -> (i32, i32) {
    %c0_i32 = arith.constant 0 : i32
    %c0_i32_0 = arith.constant 0 : i32
    %c0_i32_1 = arith.constant 0 : i32
    return %c0_i32, %c0_i32_0 : i32, i32
  }
  func.func @transform_4(%arg0: i32) -> (i32, i32) {
    %c0_i32 = arith.constant 0 : i32
    %c0_i32_0 = arith.constant 0 : i32
    %c0_i32_1 = arith.constant 0 : i32
    return %c0_i32, %c0_i32_0 : i32, i32
  }
  func.func @transform_5(%arg0: i32) -> (i32, i32, i32) {
    %c0_i32 = arith.constant 0 : i32
    %c0_i32_0 = arith.constant 0 : i32
    %c0_i32_1 = arith.constant 0 : i32
    return %arg0, %c0_i32, %c0_i32_0 : i32, i32, i32
  }
}

module attributes {stable_mosaic.version = 11 : i64} {
  func.func @_block2_proj_kernel(%arg0: i32, %arg1: memref<1x72x256xbf16, #tpu.memory_space<vmem>>, %arg2: memref<1x4x256xbf16, #tpu.memory_space<vmem>>, %arg3: memref<8x72xbf16, #tpu.memory_space<vmem>>, %arg4: memref<8x1xf32, #tpu.memory_space<vmem>>, %arg5: memref<8x1xf32, #tpu.memory_space<vmem>>, %arg6: memref<8x1xf32, #tpu.memory_space<vmem>>, %arg7: memref<8x4xbf16, #tpu.memory_space<vmem>>, %arg8: memref<8x1xf32, #tpu.memory_space<vmem>>, %arg9: memref<1x8x256xf32, #tpu.memory_space<vmem>>) attributes {dimension_semantics = [#tpu.dimension_semantics<parallel>], iteration_bounds = array<i64: 2>, scalar_prefetch = 0 : i64, scratch_operands = 0 : i64, tpu.core_type = #tpu.core_type<tc>, window_params = [{transform_indices = @transform_0, window_bounds = array<i64: 1, 72, 256>}, {transform_indices = @transform_1, window_bounds = array<i64: 1, 4, 256>}, {pipeline_mode = #tpu.pipeline_mode<synchronous>, transform_indices = @transform_2, window_bounds = array<i64: 8, 72>}, {pipeline_mode = #tpu.pipeline_mode<synchronous>, transform_indices = @transform_3, window_bounds = array<i64: 8, 1>}, {pipeline_mode = #tpu.pipeline_mode<synchronous>, transform_indices = @transform_4, window_bounds = array<i64: 8, 1>}, {pipeline_mode = #tpu.pipeline_mode<synchronous>, transform_indices = @transform_5, window_bounds = array<i64: 8, 1>}, {pipeline_mode = #tpu.pipeline_mode<synchronous>, transform_indices = @transform_6, window_bounds = array<i64: 8, 4>}, {pipeline_mode = #tpu.pipeline_mode<synchronous>, transform_indices = @transform_7, window_bounds = array<i64: 8, 1>}, {transform_indices = @transform_8, window_bounds = array<i64: 1, 8, 256>}]} {
    %c0 = arith.constant 0 : index
    %c0_0 = arith.constant 0 : index
    %c0_1 = arith.constant 0 : index
    %0 = vector.load %arg1[%c0, %c0_0, %c0_1] : memref<1x72x256xbf16, #tpu.memory_space<vmem>>, vector<1x72x256xbf16>
    %1 = vector.shape_cast %0 : vector<1x72x256xbf16> to vector<72x256xbf16>
    %c0_2 = arith.constant 0 : index
    %c0_3 = arith.constant 0 : index
    %2 = vector.load %arg3[%c0_2, %c0_3] : memref<8x72xbf16, #tpu.memory_space<vmem>>, vector<8x72xbf16>
    %c0_4 = arith.constant 0 : index
    %c0_5 = arith.constant 0 : index
    %3 = vector.load %arg4[%c0_4, %c0_5] : memref<8x1xf32, #tpu.memory_space<vmem>>, vector<8x1xf32>
    %c0_6 = arith.constant 0 : index
    %c0_7 = arith.constant 0 : index
    %4 = vector.load %arg5[%c0_6, %c0_7] : memref<8x1xf32, #tpu.memory_space<vmem>>, vector<8x1xf32>
    %c0_8 = arith.constant 0 : index
    %c0_9 = arith.constant 0 : index
    %5 = vector.load %arg6[%c0_8, %c0_9] : memref<8x1xf32, #tpu.memory_space<vmem>>, vector<8x1xf32>
    %cst = arith.constant dense<0.000000e+00> : vector<8x256xf32>
    %6 = tpu.matmul %2, %1, %cst {dimension_numbers = #tpu.dot_dimension_numbers<[1], [0], [0], [1], [0, 0, 1, 1], [], []>} : vector<8x72xbf16>, vector<72x256xbf16>, vector<8x256xf32> -> vector<8x256xf32>
    %7 = vector.broadcast %3 : vector<8x1xf32> to vector<8x256xf32>
    %8 = arith.addf %6, %7 : vector<8x256xf32>
    %9 = vector.shape_cast %8 : vector<8x256xf32> to vector<1x8x256xf32>
    %cst_10 = arith.constant dense<0.000000e+00> : vector<1xf32>
    %10 = vector.multi_reduction <add>, %9, %cst_10 [1, 2] : vector<1x8x256xf32> to vector<1xf32>
    %11 = vector.shape_cast %10 : vector<1xf32> to vector<1x1x1xf32>
    %12 = vector.extract %11[0, 0, 0] : f32 from vector<1x1x1xf32>
    %13 = vector.broadcast %12 : f32 to vector<1x1xf32>
    %cst_11 = arith.constant 2.048000e+03 : f32
    %14 = vector.broadcast %cst_11 : f32 to vector<1x1xf32>
    %15 = arith.divf %13, %14 : vector<1x1xf32>
    %16 = vector.broadcast %15 : vector<1x1xf32> to vector<8x256xf32>
    %17 = arith.subf %8, %16 : vector<8x256xf32>
    %18 = arith.mulf %17, %17 : vector<8x256xf32>
    %19 = vector.shape_cast %18 : vector<8x256xf32> to vector<1x8x256xf32>
    %cst_12 = arith.constant dense<0.000000e+00> : vector<1xf32>
    %20 = vector.multi_reduction <add>, %19, %cst_12 [1, 2] : vector<1x8x256xf32> to vector<1xf32>
    %21 = vector.shape_cast %20 : vector<1xf32> to vector<1x1x1xf32>
    %22 = vector.extract %21[0, 0, 0] : f32 from vector<1x1x1xf32>
    %23 = vector.broadcast %22 : f32 to vector<1x1xf32>
    %cst_13 = arith.constant 2.048000e+03 : f32
    %24 = vector.broadcast %cst_13 : f32 to vector<1x1xf32>
    %25 = arith.divf %23, %24 : vector<1x1xf32>
    %26 = vector.broadcast %15 : vector<1x1xf32> to vector<8x256xf32>
    %27 = arith.subf %8, %26 : vector<8x256xf32>
    %cst_14 = arith.constant 9.99999974E-6 : f32
    %28 = vector.broadcast %cst_14 : f32 to vector<1x1xf32>
    %29 = arith.addf %25, %28 : vector<1x1xf32>
    %30 = math.rsqrt %29 : vector<1x1xf32>
    %31 = vector.broadcast %30 : vector<1x1xf32> to vector<8x256xf32>
    %32 = arith.mulf %27, %31 : vector<8x256xf32>
    %33 = vector.broadcast %4 : vector<8x1xf32> to vector<8x256xf32>
    %34 = arith.mulf %32, %33 : vector<8x256xf32>
    %35 = vector.broadcast %5 : vector<8x1xf32> to vector<8x256xf32>
    %36 = arith.addf %34, %35 : vector<8x256xf32>
    %cst_15 = arith.constant 0.000000e+00 : f32
    %37 = vector.broadcast %cst_15 : f32 to vector<8x256xf32>
    %38 = arith.subf %37, %36 : vector<8x256xf32>
    %39 = math.exp %38 : vector<8x256xf32>
    %cst_16 = arith.constant 1.000000e+00 : f32
    %40 = vector.broadcast %cst_16 : f32 to vector<8x256xf32>
    %41 = arith.addf %40, %39 : vector<8x256xf32>
    %cst_17 = arith.constant 1.000000e+00 : f32
    %42 = vector.broadcast %cst_17 : f32 to vector<8x256xf32>
    %43 = arith.divf %42, %41 : vector<8x256xf32>
    %44 = arith.mulf %36, %43 : vector<8x256xf32>
    %c0_18 = arith.constant 0 : index
    %c0_19 = arith.constant 0 : index
    %45 = vector.load %arg7[%c0_18, %c0_19] : memref<8x4xbf16, #tpu.memory_space<vmem>>, vector<8x4xbf16>
    %c0_20 = arith.constant 0 : index
    %c0_21 = arith.constant 0 : index
    %c0_22 = arith.constant 0 : index
    %46 = vector.load %arg2[%c0_20, %c0_21, %c0_22] : memref<1x4x256xbf16, #tpu.memory_space<vmem>>, vector<1x4x256xbf16>
    %47 = vector.shape_cast %46 : vector<1x4x256xbf16> to vector<4x256xbf16>
    %cst_23 = arith.constant dense<0.000000e+00> : vector<8x256xf32>
    %48 = tpu.matmul %45, %47, %cst_23 {dimension_numbers = #tpu.dot_dimension_numbers<[1], [0], [0], [1], [0, 0, 1, 1], [], []>} : vector<8x4xbf16>, vector<4x256xbf16>, vector<8x256xf32> -> vector<8x256xf32>
    %c0_24 = arith.constant 0 : index
    %c0_25 = arith.constant 0 : index
    %49 = vector.load %arg8[%c0_24, %c0_25] : memref<8x1xf32, #tpu.memory_space<vmem>>, vector<8x1xf32>
    %50 = vector.broadcast %49 : vector<8x1xf32> to vector<8x256xf32>
    %51 = arith.addf %48, %50 : vector<8x256xf32>
    %52 = arith.addf %44, %51 : vector<8x256xf32>
    %c0_26 = arith.constant 0 : index
    %c0_27 = arith.constant 0 : index
    %c0_28 = arith.constant 0 : index
    %53 = vector.load %arg9[%c0_26, %c0_27, %c0_28] : memref<1x8x256xf32, #tpu.memory_space<vmem>>, vector<1x8x256xf32>
    %54 = vector.shape_cast %53 : vector<1x8x256xf32> to vector<8x256xf32>
    %55 = vector.shape_cast %52 : vector<8x256xf32> to vector<1x8x256xf32>
    tpu.vector_store %arg9[%c0_26, %c0_27, %c0_28], %55 {strides = array<i32>} : memref<1x8x256xf32, #tpu.memory_space<vmem>>, vector<1x8x256xf32>,
    return
  }
  func.func @transform_0(%arg0: i32) -> (i32, i32, i32) {
    %c0_i32 = arith.constant 0 : i32
    %c0_i32_0 = arith.constant 0 : i32
    %c0_i32_1 = arith.constant 0 : i32
    return %arg0, %c0_i32, %c0_i32_0 : i32, i32, i32
  }
  func.func @transform_1(%arg0: i32) -> (i32, i32, i32) {
    %c0_i32 = arith.constant 0 : i32
    %c0_i32_0 = arith.constant 0 : i32
    %c0_i32_1 = arith.constant 0 : i32
    return %arg0, %c0_i32, %c0_i32_0 : i32, i32, i32
  }
  func.func @transform_2(%arg0: i32) -> (i32, i32) {
    %c0_i32 = arith.constant 0 : i32
    %c0_i32_0 = arith.constant 0 : i32
    %c0_i32_1 = arith.constant 0 : i32
    return %c0_i32, %c0_i32_0 : i32, i32
  }
  func.func @transform_3(%arg0: i32) -> (i32, i32) {
    %c0_i32 = arith.constant 0 : i32
    %c0_i32_0 = arith.constant 0 : i32
    %c0_i32_1 = arith.constant 0 : i32
    return %c0_i32, %c0_i32_0 : i32, i32
  }
  func.func @transform_4(%arg0: i32) -> (i32, i32) {
    %c0_i32 = arith.constant 0 : i32
    %c0_i32_0 = arith.constant 0 : i32
    %c0_i32_1 = arith.constant 0 : i32
    return %c0_i32, %c0_i32_0 : i32, i32
  }
  func.func @transform_5(%arg0: i32) -> (i32, i32) {
    %c0_i32 = arith.constant 0 : i32
    %c0_i32_0 = arith.constant 0 : i32
    %c0_i32_1 = arith.constant 0 : i32
    return %c0_i32, %c0_i32_0 : i32, i32
  }
  func.func @transform_6(%arg0: i32) -> (i32, i32) {
    %c0_i32 = arith.constant 0 : i32
    %c0_i32_0 = arith.constant 0 : i32
    %c0_i32_1 = arith.constant 0 : i32
    return %c0_i32, %c0_i32_0 : i32, i32
  }
  func.func @transform_7(%arg0: i32) -> (i32, i32) {
    %c0_i32 = arith.constant 0 : i32
    %c0_i32_0 = arith.constant 0 : i32
    %c0_i32_1 = arith.constant 0 : i32
    return %c0_i32, %c0_i32_0 : i32, i32
  }
  func.func @transform_8(%arg0: i32) -> (i32, i32, i32) {
    %c0_i32 = arith.constant 0 : i32
    %c0_i32_0 = arith.constant 0 : i32
    %c0_i32_1 = arith.constant 0 : i32
    return %arg0, %c0_i32, %c0_i32_0 : i32, i32, i32
  }
}

</mosaic_0001>

<llo_original>
// kernel: resnet_block_forward.2
$region0: #{resnet_block_forward.2}
  #allocation0 [shape = 'u32[]', space=smem, size = 0x4, offset = 0x4, fixed_abs, tag = 'smem constant byte address 0x4 - core index']
  #allocation1 [shape = 'u32[72,128]{1,0:T(1,128)}', space=vmem, size = 0x9000, scoped, tag = 'internal scratch']
  %s0 = inlined_call_operand.vmem [shape: bf16[2,36,256], index: 0, kind: input, shape index: {}]
  %s1 = inlined_call_operand.vmem [shape: bf16[8,36], index: 1, kind: input, shape index: {}]
  %s2 = inlined_call_operand.vmem [shape: f32[8,1], index: 2, kind: input, shape index: {}]
  %s3 = inlined_call_operand.vmem [shape: f32[8,1], index: 3, kind: input, shape index: {}]
  %s4 = inlined_call_operand.vmem [shape: f32[8,1], index: 4, kind: input, shape index: {}]
  %s5 = inlined_call_operand.vmem [shape: bf16[2,8,256], index: 5, kind: output, shape index: {}]
  %s6 = sld [smem:[#allocation0]]
  $region53: #{resnet_block_forward.2} parent=0
    _
  %s8 = ssub.s32 1, %s6
  %s9 = scalar_select 0, %s8, %s6
  loop: start=0, step=1, limit=4
  $region2: #{resnet_block_forward.2} parent=0 // loop_pre_header
    _
  $region3: #{resnet_block_forward.2} parent=0 // loop_header
    %s11 = sphi 0, %s15
    %p12 = scmp.ge.s32.totalorder %s11, 4
    %s21 = sphi 0, %s23
    %s24 = sphi 0, %s21
    %s25 = sphi 0, %s24
    %s41 = sphi 0, %s25
    %s45 = sphi 0, %s45
    %s47 = sphi 0, %s45
    %s48 = sphi 0, %s47
    %s62 = sphi 0, %s48
    %s66 = sphi 0, %s66
    %s68 = sphi 0, %s66
    %s69 = sphi 0, %s68
    %s83 = sphi 0, %s69
    %s87 = sphi 0, %s87
    %s89 = sphi 0, %s87
    %s90 = sphi 0, %s89
    %s104 = sphi 0, %s90
    %s108 = sphi 0, %s108
    %s110 = sphi 0, %s108
    %s111 = sphi 0, %s110
    %s125 = sphi 0, %s111
    %s131 = sphi 0, %s133
    %s134 = sphi 0, %s131
    %s135 = sphi 0, %s134
    %s151 = sphi 0, %s135
  $region4: #{resnet_block_forward.2} parent=0 // loop_header_branch
    %14 = sbr.rel (%p12) target = $region8
  $region5: #{resnet_block_forward.2} parent=0 // loop_body
    %s16 = ssub.s32 %s11, 1
    %s17 = ssub.s32 %s11, 2
    %s18 = sadd.s32 %s11, 1
    %s19 = ssub.s32 %s11, %s18
    %p20 = scmp.eq.s32.totalorder %s19, 0
    %s22 = sadd.s32 %s21, 1
    %s23 = scalar_select %p20, %s21, %s22
    %p26 = pneg %p20
    %p27 = scmp.eq.s32.totalorder %s11, 1
    %p28 = por %p26, %p27
    %p29 = scmp.ne.s32.totalorder %s21, %s24
    %p30 = scmp.eq.s32.totalorder %s11, 0
    %p31 = por %p29, %p30
    %p32 = scmp.ne.s32.totalorder %s21, %s24
    %p33 = scmp.eq.s32.totalorder %s16, 1
    %p34 = por %p32, %p33
    %p35 = scmp.ne.s32.totalorder %s24, %s25
    %p36 = scmp.eq.s32.totalorder %s16, 0
    %p37 = por %p35, %p36
    %p38 = scmp.ne.s32.totalorder %s24, %s25
    %p39 = scmp.eq.s32.totalorder %s17, 1
    %p40 = por %p38, %p39
    %p42 = scmp.ne.s32.totalorder %s25, %s41
    %p43 = scmp.eq.s32.totalorder %s17, 0
    %p44 = por %p42, %p43
    %s46 = sadd.s32 %s45, 1
    %p49 = scmp.eq.s32.totalorder %s11, 1
    %p50 = scmp.ne.s32.totalorder %s45, %s47
    %p51 = scmp.eq.s32.totalorder %s11, 0
    %p52 = por %p50, %p51
    %p53 = scmp.ne.s32.totalorder %s45, %s47
    %p54 = scmp.eq.s32.totalorder %s16, 1
    %p55 = por %p53, %p54
    %p56 = scmp.ne.s32.totalorder %s47, %s48
    %p57 = scmp.eq.s32.totalorder %s16, 0
    %p58 = por %p56, %p57
    %p59 = scmp.ne.s32.totalorder %s47, %s48
    %p60 = scmp.eq.s32.totalorder %s17, 1
    %p61 = por %p59, %p60
    %p63 = scmp.ne.s32.totalorder %s48, %s62
    %p64 = scmp.eq.s32.totalorder %s17, 0
    %p65 = por %p63, %p64
    %s67 = sadd.s32 %s66, 1
    %p70 = scmp.eq.s32.totalorder %s11, 1
    %p71 = scmp.ne.s32.totalorder %s66, %s68
    %p72 = scmp.eq.s32.totalorder %s11, 0
    %p73 = por %p71, %p72
    %p74 = scmp.ne.s32.totalorder %s66, %s68
    %p75 = scmp.eq.s32.totalorder %s16, 1
    %p76 = por %p74, %p75
    %p77 = scmp.ne.s32.totalorder %s68, %s69
    %p78 = scmp.eq.s32.totalorder %s16, 0
    %p79 = por %p77, %p78
    %p80 = scmp.ne.s32.totalorder %s68, %s69
    %p81 = scmp.eq.s32.totalorder %s17, 1
    %p82 = por %p80, %p81
    %p84 = scmp.ne.s32.totalorder %s69, %s83
    %p85 = scmp.eq.s32.totalorder %s17, 0
    %p86 = por %p84, %p85
    %s88 = sadd.s32 %s87, 1
    %p91 = scmp.eq.s32.totalorder %s11, 1
    %p92 = scmp.ne.s32.totalorder %s87, %s89
    %p93 = scmp.eq.s32.totalorder %s11, 0
    %p94 = por %p92, %p93
    %p95 = scmp.ne.s32.totalorder %s87, %s89
    %p96 = scmp.eq.s32.totalorder %s16, 1
    %p97 = por %p95, %p96
    %p98 = scmp.ne.s32.totalorder %s89, %s90
    %p99 = scmp.eq.s32.totalorder %s16, 0
    %p100 = por %p98, %p99
    %p101 = scmp.ne.s32.totalorder %s89, %s90
    %p102 = scmp.eq.s32.totalorder %s17, 1
    %p103 = por %p101, %p102
    %p105 = scmp.ne.s32.totalorder %s90, %s104
    %p106 = scmp.eq.s32.totalorder %s17, 0
    %p107 = por %p105, %p106
    %s109 = sadd.s32 %s108, 1
    %p112 = scmp.eq.s32.totalorder %s11, 1
    %p113 = scmp.ne.s32.totalorder %s108, %s110
    %p114 = scmp.eq.s32.totalorder %s11, 0
    %p115 = por %p113, %p114
    %p116 = scmp.ne.s32.totalorder %s108, %s110
    %p117 = scmp.eq.s32.totalorder %s16, 1
    %p118 = por %p116, %p117
    %p119 = scmp.ne.s32.totalorder %s110, %s111
    %p120 = scmp.eq.s32.totalorder %s16, 0
    %p121 = por %p119, %p120
    %p122 = scmp.ne.s32.totalorder %s110, %s111
    %p123 = scmp.eq.s32.totalorder %s17, 1
    %p124 = por %p122, %p123
    %p126 = scmp.ne.s32.totalorder %s111, %s125
    %p127 = scmp.eq.s32.totalorder %s17, 0
    %p128 = por %p126, %p127
    %s129 = ssub.s32 %s11, %s18
    %p130 = scmp.eq.s32.totalorder %s129, 0
    %s132 = sadd.s32 %s131, 1
    %s133 = scalar_select %p130, %s131, %s132
    %p136 = pneg %p130
    %p137 = scmp.eq.s32.totalorder %s11, 1
    %p138 = por %p136, %p137
    %p139 = scmp.ne.s32.totalorder %s131, %s134
    %p140 = scmp.eq.s32.totalorder %s11, 0
    %p141 = por %p139, %p140
    %p142 = scmp.ne.s32.totalorder %s131, %s134
    %p143 = scmp.eq.s32.totalorder %s16, 1
    %p144 = por %p142, %p143
    %p145 = scmp.ne.s32.totalorder %s134, %s135
    %p146 = scmp.eq.s32.totalorder %s16, 0
    %p147 = por %p145, %p146
    %p148 = scmp.ne.s32.totalorder %s134, %s135
    %p149 = scmp.eq.s32.totalorder %s17, 1
    %p150 = por %p148, %p149
    %p152 = scmp.ne.s32.totalorder %s135, %s151
    %p153 = scmp.eq.s32.totalorder %s17, 0
    %p154 = por %p152, %p153
    %p155 = scmp.le.s32.totalorder 1, %s11
    %p156 = scmp.lt.s32.totalorder %s11, 3
    %p157 = pnand %p155, %p156
    %p158 = pneg %p157
    // Predicated region
    $region9: #{resnet_block_forward.2} parent=5 // pred_check
      _
    $region10: #{resnet_block_forward.2} parent=5 // pred_check_branch
      %160 = sbr.rel (%p157) target = $region12
    $region11: #{resnet_block_forward.2} parent=5 // pred_region
      %s161 = ssub.s32 %s11, 1
      // Predicated region
      $region13: #{resnet_block_forward.2} parent=11 // pred_check
        %p162 = pneg %p58
      $region14: #{resnet_block_forward.2} parent=11 // pred_check_branch
        %164 = sbr.rel (%p162) target = $region16
      $region15: #{resnet_block_forward.2} parent=11 // pred_region
        _
      $region16: #{resnet_block_forward.2} parent=11 // pred_fallthru
        _
      // Predicated region
      $region17: #{resnet_block_forward.2} parent=11 // pred_check
        %p165 = pneg %p79
      $region18: #{resnet_block_forward.2} parent=11 // pred_check_branch
        %167 = sbr.rel (%p165) target = $region20
      $region19: #{resnet_block_forward.2} parent=11 // pred_region
        _
      $region20: #{resnet_block_forward.2} parent=11 // pred_fallthru
        _
      // Predicated region
      $region21: #{resnet_block_forward.2} parent=11 // pred_check
        %p168 = pneg %p100
      $region22: #{resnet_block_forward.2} parent=11 // pred_check_branch
        %170 = sbr.rel (%p168) target = $region24
      $region23: #{resnet_block_forward.2} parent=11 // pred_region
        _
      $region24: #{resnet_block_forward.2} parent=11 // pred_fallthru
        _
      // Predicated region
      $region25: #{resnet_block_forward.2} parent=11 // pred_check
        %p171 = pneg %p121
      $region26: #{resnet_block_forward.2} parent=11 // pred_check_branch
        %173 = sbr.rel (%p171) target = $region28
      $region27: #{resnet_block_forward.2} parent=11 // pred_region
        _
      $region28: #{resnet_block_forward.2} parent=11 // pred_fallthru
        _
    $region12: #{resnet_block_forward.2} parent=5 // pred_fallthru
      _
    %p174 = scmp.lt.s32.totalorder %s11, 2
    // Predicated region
    $region29: #{resnet_block_forward.2} parent=5 // pred_check
      %p175 = pneg %p174
    $region30: #{resnet_block_forward.2} parent=5 // pred_check_branch
      %177 = sbr.rel (%p175) target = $region32
    $region31: #{resnet_block_forward.2} parent=5 // pred_region
      // Predicated region
      $region33: #{resnet_block_forward.2} parent=31 // pred_check
        %p178 = pneg %p31
      $region34: #{resnet_block_forward.2} parent=31 // pred_check_branch
        %180 = sbr.rel (%p178) target = $region36
      $region35: #{resnet_block_forward.2} parent=31 // pred_region
        %p181 = scmp.lt.s32.totalorder %s11, 1
        %s182 = scalar_select %p181, %s11, 1
        %s183 = smul.addr %s182, 10
        %s184 = smul.addr %s183, 4
        %s185 = scalar_lea.vmem %s0, %s184
      $region36: #{resnet_block_forward.2} parent=31 // pred_fallthru
        _
    $region32: #{resnet_block_forward.2} parent=5 // pred_fallthru
      _
    %p186 = scmp.le.s32.totalorder 1, %s11
    %p187 = scmp.lt.s32.totalorder %s11, 3
    %p188 = pnand %p186, %p187
    %p189 = pneg %p188
    // Predicated region
    $region37: #{resnet_block_forward.2} parent=5 // pred_check
      _
    $region38: #{resnet_block_forward.2} parent=5 // pred_check_branch
      %191 = sbr.rel (%p188) target = $region40
    $region39: #{resnet_block_forward.2} parent=5 // pred_region
      %s192 = ssub.s32 %s11, 1
      %p193 = scmp.lt.s32.totalorder %s16, 1
      %s194 = scalar_select %p193, %s16, 1
      %s195 = smul.addr %s194, 10
      %s196 = smul.addr %s195, 4
      %s197 = scalar_lea.vmem %s0, %s196
      %p198 = pneg %p37
      %p199 = pneg %p34
      %p200 = pneg %p58
      %p201 = pneg %p55
      %p202 = pneg %p79
      %p203 = pneg %p76
      %p204 = pneg %p100
      %p205 = pneg %p97
      %p206 = pneg %p121
      %p207 = pneg %p118
      %p208 = pneg %p147
      %p209 = pneg %p144
      %p210 = scmp.lt.s32.totalorder %s16, 1
      %s211 = scalar_select %p210, %s16, 1
      %s212 = smul.addr %s211, 2
      %s213 = smul.addr %s212, 4
      %s214 = scalar_lea.vmem %s5, %s213
      %p215 = scmp.lt.s32.totalorder %s16, 1
      %s216 = scalar_select %p215, %s16, 1
      %s217 = smul.addr %s216, 10
      %s218 = smul.addr %s217, 4
      %s219 = scalar_lea.vmem %s0, %s218
      %p220 = scmp.lt.s32.totalorder %s16, 1
      %s221 = scalar_select %p220, %s16, 1
      %s222 = smul.addr %s221, 2
      %s223 = smul.addr %s222, 4
      %s224 = scalar_lea.vmem %s5, %s223
      %v226 = vld [vmem:[%s219] sm:$0xff]
      %v227 = vld [vmem:[%s219 + $0x8] sm:$0xff]
      %v228 = vld [vmem:[%s219 + $0x10] sm:$0xff]
      %v229 = vld [vmem:[%s219 + $0x18] sm:$0xff]
      %v230 = vld [vmem:[%s219 + $0x20] sm:$0x33]
      %v231 = vld [vmem:[%s1] sm:$0xf]
      %v232 = vld [vmem:[%s2] sm:$0xff]
      %v233 = vld [vmem:[%s3] sm:$0xff]
      %v234 = vld [vmem:[%s4] sm:$0xff]
      %236 = vset.pattern.permute.xlu0 0
      %237 = vperm.xlu0 %236, %v232
      %v238 = vpop.permute.xlu0 %237
      %v245 = vunpack.c.l.b16 %v226
      %v246 = vunpack.c.h.b16 %v226
      %v247 = vunpack.c.l.b16 %v227
      %v248 = vunpack.c.h.b16 %v227
      %v249 = vunpack.c.l.b16 %v228
      %v250 = vunpack.c.h.b16 %v228
      %v251 = vunpack.c.l.b16 %v229
      %v252 = vunpack.c.h.b16 %v229
      %v253 = vunpack.c.l.b16 %v230
      %v254 = vunpack.c.h.b16 %v230
      %v255 = vpack.c.b16 %v247, %v245
      %v256 = vpack.c.b16 %v248, %v246
      %v257 = vpack.c.b16 %v251, %v249
      %v258 = vpack.c.b16 %v252, %v250
      %v259 = vpack.c.b16 %v253, %v253
      %v260 = vpack.c.b16 %v254, %v254
      %vm265 = vcmask 293888
      %v267 = vsel %vm265, %v231, 0
      %vm269 = vcmask 1041408
      %v271 = vsel %vm269, %v259, 0
      %v274 = vsel %vm269, %v260, 0
      %276 = vmatpush.bf16.msra.mxu0 0
      %277 = vmatpush.bf16.msra.mxu0 0
      %278 = vmatpush.bf16.msra.mxu0 0
      %279 = vmatpush.bf16.msra.mxu0 0
      %280 = vmatpush.bf16.msra.mxu0 0
      %281 = vmatpush.bf16.msra.mxu0 %v271
      %282 = vmatpush.bf16.msra.mxu0 %v257
      %283 = vmatpush.bf16.msra.mxu0 %v255
      %284 = vmatmul.bf16.gmra.mxu0 %v267
      %v285 = vpop.f32.mrf.mxu0
      %v286 = vadd.f32 %v238, %v285
      %v287 = vpop.f32.mrf.mxu0
      %288 = vdwg.mxu0
      %289 = vmatpush.bf16.msra.mxu0 0
      %290 = vmatpush.bf16.msra.mxu0 0
      %291 = vmatpush.bf16.msra.mxu0 0
      %292 = vmatpush.bf16.msra.mxu0 0
      %293 = vmatpush.bf16.msra.mxu0 0
      %294 = vmatpush.bf16.msra.mxu0 %v274
      %295 = vmatpush.bf16.msra.mxu0 %v258
      %296 = vmatpush.bf16.msra.mxu0 %v256
      %297 = vmatmul.bf16.gmra.mxu0 %v267
      %v298 = vpop.f32.mrf.mxu0
      %v299 = vadd.f32 %v238, %v298
      %v300 = vpop.f32.mrf.mxu0
      %301 = vdwg.mxu0
      %v302 = vadd.f32 %v286, %v299
      %303 = vadd.xlane.f32.xlu0 %v302
      %v304 = vpop.xlane.xlu0 %303
      %v305 = vrot.slane %v304, 4
      %v306 = vadd.f32 %v304, %v305
      %v307 = vrot.slane %v306, 2
      %v308 = vadd.f32 %v306, %v307
      %v309 = vrot.slane %v308, 1
      %v310 = vadd.f32 %v308, %v309
      %s311 = vtos %v310
      %v312 = vstv %s311
      %v313 = vrcp.pop 2048.0
      %v314 = vmul.f32 2048.0, %v313
      %v315 = vsub.f32 1.0, %v314
      %v316 = vmul.f32 %v313, %v315
      %v317 = vadd.f32 %v313, %v316
      %vm318 = vweird.f32 %v313
      %v319 = vsel %vm318, %v313, %v317
      %v320 = vmul.f32 %v312, %v319
      %v321 = vsub.f32 %v286, %v320
      %v322 = vsub.f32 %v299, %v320
      %v323 = vmul.f32 %v321, %v321
      %v324 = vmul.f32 %v322, %v322
      %v325 = vadd.f32 %v323, %v324
      %326 = vadd.xlane.f32.xlu0 %v325
      %v327 = vpop.xlane.xlu0 %326
      %v328 = vrot.slane %v327, 4
      %v329 = vadd.f32 %v327, %v328
      %v330 = vrot.slane %v329, 2
      %v331 = vadd.f32 %v329, %v330
      %v332 = vrot.slane %v331, 1
      %v333 = vadd.f32 %v331, %v332
      %s334 = vtos %v333
      %v335 = vstv %s334
      %v336 = vmul.f32 %v335, %v319
      %v337 = vadd.f32 %v336, 1e-05
      %v338 = vrsqrt.pop %v337
      %v339 = vmul.f32 %v338, %v337
      %v340 = vmul.f32 %v339, %v338
      %v341 = vmul.f32 0.5, %v340
      %v342 = vsub.f32 1.5, %v341
      %v343 = vmul.f32 %v338, %v342
      %vm344 = vweird.f32 %v337
      %vm345 = vweird.f32 %v338
      %vm346 = vmor %vm344, %vm345
      %v347 = vsel %vm346, %v338, %v343
      %v348 = vmul.f32 %v321, %v347
      %v349 = vmul.f32 %v322, %v347
      %351 = vset.pattern.permute.xlu0 0
      %352 = vperm.xlu0 %351, %v233
      %v353 = vpop.permute.xlu0 %352
      %v355 = vmul.f32 %v348, %v353
      %v356 = vmul.f32 %v349, %v353
      %358 = vset.pattern.permute.xlu0 0
      %359 = vperm.xlu0 %358, %v234
      %v360 = vpop.permute.xlu0 %359
      %v362 = vadd.f32 %v355, %v360
      %v363 = vadd.f32 %v356, %v360
      %v364 = vsub.f32 0.0, %v362
      %v365 = vsub.f32 0.0, %v363
      %v366 = vmul.f32 %v364, 1.442695
      %v367 = vpow.pop %v366
      %v368 = vmul.f32 %v365, 1.442695
      %v369 = vpow.pop %v368
      %v370 = vadd.f32 %v367, 1.0
      %v371 = vadd.f32 %v369, 1.0
      %v372 = vrcp.pop %v370
      %v373 = vmul.f32 %v370, %v372
      %v374 = vsub.f32 1.0, %v373
      %v375 = vmul.f32 %v372, %v374
      %v376 = vadd.f32 %v372, %v375
      %vm377 = vweird.f32 %v370
      %vm378 = vweird.f32 %v372
      %vm379 = vmor %vm377, %vm378
      %v380 = vsel %vm379, %v372, %v376
      %v381 = vand.u32 2147483647, %v370
      %vm382 = vcmp.eq.f32.partialorder %v381, 8.507059e+37
      %v383 = vand.u32 %v370, 2147483648
      %v384 = vor.u32 1.1754944e-38, %v383
      %v385 = vsel %vm382, %v384, %v380
      %v386 = vmul.f32 1.0, %v385
      %v387 = vrcp.pop %v371
      %v388 = vmul.f32 %v371, %v387
      %v389 = vsub.f32 1.0, %v388
      %v390 = vmul.f32 %v387, %v389
      %v391 = vadd.f32 %v387, %v390
      %vm392 = vweird.f32 %v371
      %vm393 = vweird.f32 %v387
      %vm394 = vmor %vm392, %vm393
      %v395 = vsel %vm394, %v387, %v391
      %v396 = vand.u32 2147483647, %v371
      %vm397 = vcmp.eq.f32.partialorder %v396, 8.507059e+37
      %v398 = vand.u32 %v371, 2147483648
      %v399 = vor.u32 1.1754944e-38, %v398
      %v400 = vsel %vm397, %v399, %v395
      %v401 = vmul.f32 1.0, %v400
      %v402 = vmul.f32 %v362, %v386
      %v403 = vmul.f32 %v363, %v401
      %v404 = vpack.c.bf16 %v403, %v402
      %405 = vst [vmem:[%s224] sm:$0xff] %v404
      %p406 = scmp.lt.s32.totalorder %s16, 1
      %s407 = scalar_select %p406, %s16, 1
      %s408 = smul.addr %s407, 2
      %s409 = smul.addr %s408, 4
      %s410 = scalar_lea.vmem %s5, %s409
      // Predicated region
      $region41: #{resnet_block_forward.2} parent=39 // pred_check
        %p411 = pneg %p144
      $region42: #{resnet_block_forward.2} parent=39 // pred_check_branch
        %413 = sbr.rel (%p411) target = $region44
      $region43: #{resnet_block_forward.2} parent=39 // pred_region
        _
      $region44: #{resnet_block_forward.2} parent=39 // pred_fallthru
        _
    $region40: #{resnet_block_forward.2} parent=5 // pred_fallthru
      _
    %p414 = scmp.le.s32.totalorder 2, %s11
    // Predicated region
    $region45: #{resnet_block_forward.2} parent=5 // pred_check
      %p415 = pneg %p414
    $region46: #{resnet_block_forward.2} parent=5 // pred_check_branch
      %417 = sbr.rel (%p415) target = $region48
    $region47: #{resnet_block_forward.2} parent=5 // pred_region
      %s418 = ssub.s32 %s11, 2
      // Predicated region
      $region49: #{resnet_block_forward.2} parent=47 // pred_check
        %p419 = pneg %p150
      $region50: #{resnet_block_forward.2} parent=47 // pred_check_branch
        %421 = sbr.rel (%p419) target = $region52
      $region51: #{resnet_block_forward.2} parent=47 // pred_region
        %p422 = scmp.lt.s32.totalorder %s17, 1
        %s423 = scalar_select %p422, %s17, 1
        %s424 = smul.addr %s423, 2
        %s425 = smul.addr %s424, 4
        %s426 = scalar_lea.vmem %s5, %s425
      $region52: #{resnet_block_forward.2} parent=47 // pred_fallthru
        _
    $region48: #{resnet_block_forward.2} parent=5 // pred_fallthru
      _
  $region6: #{resnet_block_forward.2} parent=0 // loop_footer
    %s15 = sadd.s32 1, %s11
  $region7: #{resnet_block_forward.2} parent=0 // loop_footer_branch
    %10 = sbr.rel target = $region3
  $region8: #{resnet_block_forward.2} parent=0 // loop_exit
    _

// kernel: resnet_block_forward.3
$region0: #{resnet_block_forward.3}
  #allocation0 [shape = 'u32[]', space=smem, size = 0x4, offset = 0x4, fixed_abs, tag = 'smem constant byte address 0x4 - core index']
  #allocation1 [shape = 'u32[72,128]{1,0:T(1,128)}', space=vmem, size = 0x9000, scoped, tag = 'internal scratch']
  %s0 = inlined_call_operand.vmem [shape: bf16[2,72,256], index: 0, kind: input, shape index: {}]
  %s1 = inlined_call_operand.vmem [shape: bf16[2,4,256], index: 1, kind: input, shape index: {}]
  %s2 = inlined_call_operand.vmem [shape: bf16[8,72], index: 2, kind: input, shape index: {}]
  %s3 = inlined_call_operand.vmem [shape: f32[8,1], index: 3, kind: input, shape index: {}]
  %s4 = inlined_call_operand.vmem [shape: f32[8,1], index: 4, kind: input, shape index: {}]
  %s5 = inlined_call_operand.vmem [shape: f32[8,1], index: 5, kind: input, shape index: {}]
  %s6 = inlined_call_operand.vmem [shape: bf16[8,4], index: 6, kind: input, shape index: {}]
  %s7 = inlined_call_operand.vmem [shape: f32[8,1], index: 7, kind: input, shape index: {}]
  %s8 = inlined_call_operand.vmem [shape: f32[2,8,256], index: 8, kind: output, shape index: {}]
  %s9 = sld [smem:[#allocation0]]
  $region65: #{resnet_block_forward.3} parent=0
    _
  %s11 = ssub.s32 1, %s9
  %s12 = scalar_select 0, %s11, %s9
  loop: start=0, step=1, limit=4
  $region2: #{resnet_block_forward.3} parent=0 // loop_pre_header
    _
  $region3: #{resnet_block_forward.3} parent=0 // loop_header
    %s14 = sphi 0, %s18
    %p15 = scmp.ge.s32.totalorder %s14, 4
    %s24 = sphi 0, %s26
    %s27 = sphi 0, %s24
    %s28 = sphi 0, %s27
    %s44 = sphi 0, %s28
    %s50 = sphi 0, %s52
    %s53 = sphi 0, %s50
    %s54 = sphi 0, %s53
    %s70 = sphi 0, %s54
    %s74 = sphi 0, %s74
    %s76 = sphi 0, %s74
    %s77 = sphi 0, %s76
    %s91 = sphi 0, %s77
    %s95 = sphi 0, %s95
    %s97 = sphi 0, %s95
    %s98 = sphi 0, %s97
    %s112 = sphi 0, %s98
    %s116 = sphi 0, %s116
    %s118 = sphi 0, %s116
    %s119 = sphi 0, %s118
    %s133 = sphi 0, %s119
    %s137 = sphi 0, %s137
    %s139 = sphi 0, %s137
    %s140 = sphi 0, %s139
    %s154 = sphi 0, %s140
    %s158 = sphi 0, %s158
    %s160 = sphi 0, %s158
    %s161 = sphi 0, %s160
    %s175 = sphi 0, %s161
    %s179 = sphi 0, %s179
    %s181 = sphi 0, %s179
    %s182 = sphi 0, %s181
    %s196 = sphi 0, %s182
    %s202 = sphi 0, %s204
    %s205 = sphi 0, %s202
    %s206 = sphi 0, %s205
    %s222 = sphi 0, %s206
  $region4: #{resnet_block_forward.3} parent=0 // loop_header_branch
    %17 = sbr.rel (%p15) target = $region8
  $region5: #{resnet_block_forward.3} parent=0 // loop_body
    %s19 = ssub.s32 %s14, 1
    %s20 = ssub.s32 %s14, 2
    %s21 = sadd.s32 %s14, 1
    %s22 = ssub.s32 %s14, %s21
    %p23 = scmp.eq.s32.totalorder %s22, 0
    %s25 = sadd.s32 %s24, 1
    %s26 = scalar_select %p23, %s24, %s25
    %p29 = pneg %p23
    %p30 = scmp.eq.s32.totalorder %s14, 1
    %p31 = por %p29, %p30
    %p32 = scmp.ne.s32.totalorder %s24, %s27
    %p33 = scmp.eq.s32.totalorder %s14, 0
    %p34 = por %p32, %p33
    %p35 = scmp.ne.s32.totalorder %s24, %s27
    %p36 = scmp.eq.s32.totalorder %s19, 1
    %p37 = por %p35, %p36
    %p38 = scmp.ne.s32.totalorder %s27, %s28
    %p39 = scmp.eq.s32.totalorder %s19, 0
    %p40 = por %p38, %p39
    %p41 = scmp.ne.s32.totalorder %s27, %s28
    %p42 = scmp.eq.s32.totalorder %s20, 1
    %p43 = por %p41, %p42
    %p45 = scmp.ne.s32.totalorder %s28, %s44
    %p46 = scmp.eq.s32.totalorder %s20, 0
    %p47 = por %p45, %p46
    %s48 = ssub.s32 %s14, %s21
    %p49 = scmp.eq.s32.totalorder %s48, 0
    %s51 = sadd.s32 %s50, 1
    %s52 = scalar_select %p49, %s50, %s51
    %p55 = pneg %p49
    %p56 = scmp.eq.s32.totalorder %s14, 1
    %p57 = por %p55, %p56
    %p58 = scmp.ne.s32.totalorder %s50, %s53
    %p59 = scmp.eq.s32.totalorder %s14, 0
    %p60 = por %p58, %p59
    %p61 = scmp.ne.s32.totalorder %s50, %s53
    %p62 = scmp.eq.s32.totalorder %s19, 1
    %p63 = por %p61, %p62
    %p64 = scmp.ne.s32.totalorder %s53, %s54
    %p65 = scmp.eq.s32.totalorder %s19, 0
    %p66 = por %p64, %p65
    %p67 = scmp.ne.s32.totalorder %s53, %s54
    %p68 = scmp.eq.s32.totalorder %s20, 1
    %p69 = por %p67, %p68
    %p71 = scmp.ne.s32.totalorder %s54, %s70
    %p72 = scmp.eq.s32.totalorder %s20, 0
    %p73 = por %p71, %p72
    %s75 = sadd.s32 %s74, 1
    %p78 = scmp.eq.s32.totalorder %s14, 1
    %p79 = scmp.ne.s32.totalorder %s74, %s76
    %p80 = scmp.eq.s32.totalorder %s14, 0
    %p81 = por %p79, %p80
    %p82 = scmp.ne.s32.totalorder %s74, %s76
    %p83 = scmp.eq.s32.totalorder %s19, 1
    %p84 = por %p82, %p83
    %p85 = scmp.ne.s32.totalorder %s76, %s77
    %p86 = scmp.eq.s32.totalorder %s19, 0
    %p87 = por %p85, %p86
    %p88 = scmp.ne.s32.totalorder %s76, %s77
    %p89 = scmp.eq.s32.totalorder %s20, 1
    %p90 = por %p88, %p89
    %p92 = scmp.ne.s32.totalorder %s77, %s91
    %p93 = scmp.eq.s32.totalorder %s20, 0
    %p94 = por %p92, %p93
    %s96 = sadd.s32 %s95, 1
    %p99 = scmp.eq.s32.totalorder %s14, 1
    %p100 = scmp.ne.s32.totalorder %s95, %s97
    %p101 = scmp.eq.s32.totalorder %s14, 0
    %p102 = por %p100, %p101
    %p103 = scmp.ne.s32.totalorder %s95, %s97
    %p104 = scmp.eq.s32.totalorder %s19, 1
    %p105 = por %p103, %p104
    %p106 = scmp.ne.s32.totalorder %s97, %s98
    %p107 = scmp.eq.s32.totalorder %s19, 0
    %p108 = por %p106, %p107
    %p109 = scmp.ne.s32.totalorder %s97, %s98
    %p110 = scmp.eq.s32.totalorder %s20, 1
    %p111 = por %p109, %p110
    %p113 = scmp.ne.s32.totalorder %s98, %s112
    %p114 = scmp.eq.s32.totalorder %s20, 0
    %p115 = por %p113, %p114
    %s117 = sadd.s32 %s116, 1
    %p120 = scmp.eq.s32.totalorder %s14, 1
    %p121 = scmp.ne.s32.totalorder %s116, %s118
    %p122 = scmp.eq.s32.totalorder %s14, 0
    %p123 = por %p121, %p122
    %p124 = scmp.ne.s32.totalorder %s116, %s118
    %p125 = scmp.eq.s32.totalorder %s19, 1
    %p126 = por %p124, %p125
    %p127 = scmp.ne.s32.totalorder %s118, %s119
    %p128 = scmp.eq.s32.totalorder %s19, 0
    %p129 = por %p127, %p128
    %p130 = scmp.ne.s32.totalorder %s118, %s119
    %p131 = scmp.eq.s32.totalorder %s20, 1
    %p132 = por %p130, %p131
    %p134 = scmp.ne.s32.totalorder %s119, %s133
    %p135 = scmp.eq.s32.totalorder %s20, 0
    %p136 = por %p134, %p135
    %s138 = sadd.s32 %s137, 1
    %p141 = scmp.eq.s32.totalorder %s14, 1
    %p142 = scmp.ne.s32.totalorder %s137, %s139
    %p143 = scmp.eq.s32.totalorder %s14, 0
    %p144 = por %p142, %p143
    %p145 = scmp.ne.s32.totalorder %s137, %s139
    %p146 = scmp.eq.s32.totalorder %s19, 1
    %p147 = por %p145, %p146
    %p148 = scmp.ne.s32.totalorder %s139, %s140
    %p149 = scmp.eq.s32.totalorder %s19, 0
    %p150 = por %p148, %p149
    %p151 = scmp.ne.s32.totalorder %s139, %s140
    %p152 = scmp.eq.s32.totalorder %s20, 1
    %p153 = por %p151, %p152
    %p155 = scmp.ne.s32.totalorder %s140, %s154
    %p156 = scmp.eq.s32.totalorder %s20, 0
    %p157 = por %p155, %p156
    %s159 = sadd.s32 %s158, 1
    %p162 = scmp.eq.s32.totalorder %s14, 1
    %p163 = scmp.ne.s32.totalorder %s158, %s160
    %p164 = scmp.eq.s32.totalorder %s14, 0
    %p165 = por %p163, %p164
    %p166 = scmp.ne.s32.totalorder %s158, %s160
    %p167 = scmp.eq.s32.totalorder %s19, 1
    %p168 = por %p166, %p167
    %p169 = scmp.ne.s32.totalorder %s160, %s161
    %p170 = scmp.eq.s32.totalorder %s19, 0
    %p171 = por %p169, %p170
    %p172 = scmp.ne.s32.totalorder %s160, %s161
    %p173 = scmp.eq.s32.totalorder %s20, 1
    %p174 = por %p172, %p173
    %p176 = scmp.ne.s32.totalorder %s161, %s175
    %p177 = scmp.eq.s32.totalorder %s20, 0
    %p178 = por %p176, %p177
    %s180 = sadd.s32 %s179, 1
    %p183 = scmp.eq.s32.totalorder %s14, 1
    %p184 = scmp.ne.s32.totalorder %s179, %s181
    %p185 = scmp.eq.s32.totalorder %s14, 0
    %p186 = por %p184, %p185
    %p187 = scmp.ne.s32.totalorder %s179, %s181
    %p188 = scmp.eq.s32.totalorder %s19, 1
    %p189 = por %p187, %p188
    %p190 = scmp.ne.s32.totalorder %s181, %s182
    %p191 = scmp.eq.s32.totalorder %s19, 0
    %p192 = por %p190, %p191
    %p193 = scmp.ne.s32.totalorder %s181, %s182
    %p194 = scmp.eq.s32.totalorder %s20, 1
    %p195 = por %p193, %p194
    %p197 = scmp.ne.s32.totalorder %s182, %s196
    %p198 = scmp.eq.s32.totalorder %s20, 0
    %p199 = por %p197, %p198
    %s200 = ssub.s32 %s14, %s21
    %p201 = scmp.eq.s32.totalorder %s200, 0
    %s203 = sadd.s32 %s202, 1
    %s204 = scalar_select %p201, %s202, %s203
    %p207 = pneg %p201
    %p208 = scmp.eq.s32.totalorder %s14, 1
    %p209 = por %p207, %p208
    %p210 = scmp.ne.s32.totalorder %s202, %s205
    %p211 = scmp.eq.s32.totalorder %s14, 0
    %p212 = por %p210, %p211
    %p213 = scmp.ne.s32.totalorder %s202, %s205
    %p214 = scmp.eq.s32.totalorder %s19, 1
    %p215 = por %p213, %p214
    %p216 = scmp.ne.s32.totalorder %s205, %s206
    %p217 = scmp.eq.s32.totalorder %s19, 0
    %p218 = por %p216, %p217
    %p219 = scmp.ne.s32.totalorder %s205, %s206
    %p220 = scmp.eq.s32.totalorder %s20, 1
    %p221 = por %p219, %p220
    %p223 = scmp.ne.s32.totalorder %s206, %s222
    %p224 = scmp.eq.s32.totalorder %s20, 0
    %p225 = por %p223, %p224
    %p226 = scmp.le.s32.totalorder 1, %s14
    %p227 = scmp.lt.s32.totalorder %s14, 3
    %p228 = pnand %p226, %p227
    %p229 = pneg %p228
    // Predicated region
    $region9: #{resnet_block_forward.3} parent=5 // pred_check
      _
    $region10: #{resnet_block_forward.3} parent=5 // pred_check_branch
      %231 = sbr.rel (%p228) target = $region12
    $region11: #{resnet_block_forward.3} parent=5 // pred_region
      %s232 = ssub.s32 %s14, 1
      // Predicated region
      $region13: #{resnet_block_forward.3} parent=11 // pred_check
        %p233 = pneg %p87
      $region14: #{resnet_block_forward.3} parent=11 // pred_check_branch
        %235 = sbr.rel (%p233) target = $region16
      $region15: #{resnet_block_forward.3} parent=11 // pred_region
        _
      $region16: #{resnet_block_forward.3} parent=11 // pred_fallthru
        _
      // Predicated region
      $region17: #{resnet_block_forward.3} parent=11 // pred_check
        %p236 = pneg %p108
      $region18: #{resnet_block_forward.3} parent=11 // pred_check_branch
        %238 = sbr.rel (%p236) target = $region20
      $region19: #{resnet_block_forward.3} parent=11 // pred_region
        _
      $region20: #{resnet_block_forward.3} parent=11 // pred_fallthru
        _
      // Predicated region
      $region21: #{resnet_block_forward.3} parent=11 // pred_check
        %p239 = pneg %p129
      $region22: #{resnet_block_forward.3} parent=11 // pred_check_branch
        %241 = sbr.rel (%p239) target = $region24
      $region23: #{resnet_block_forward.3} parent=11 // pred_region
        _
      $region24: #{resnet_block_forward.3} parent=11 // pred_fallthru
        _
      // Predicated region
      $region25: #{resnet_block_forward.3} parent=11 // pred_check
        %p242 = pneg %p150
      $region26: #{resnet_block_forward.3} parent=11 // pred_check_branch
        %244 = sbr.rel (%p242) target = $region28
      $region27: #{resnet_block_forward.3} parent=11 // pred_region
        _
      $region28: #{resnet_block_forward.3} parent=11 // pred_fallthru
        _
      // Predicated region
      $region29: #{resnet_block_forward.3} parent=11 // pred_check
        %p245 = pneg %p171
      $region30: #{resnet_block_forward.3} parent=11 // pred_check_branch
        %247 = sbr.rel (%p245) target = $region32
      $region31: #{resnet_block_forward.3} parent=11 // pred_region
        _
      $region32: #{resnet_block_forward.3} parent=11 // pred_fallthru
        _
      // Predicated region
      $region33: #{resnet_block_forward.3} parent=11 // pred_check
        %p248 = pneg %p192
      $region34: #{resnet_block_forward.3} parent=11 // pred_check_branch
        %250 = sbr.rel (%p248) target = $region36
      $region35: #{resnet_block_forward.3} parent=11 // pred_region
        _
      $region36: #{resnet_block_forward.3} parent=11 // pred_fallthru
        _
    $region12: #{resnet_block_forward.3} parent=5 // pred_fallthru
      _
    %p251 = scmp.lt.s32.totalorder %s14, 2
    // Predicated region
    $region37: #{resnet_block_forward.3} parent=5 // pred_check
      %p252 = pneg %p251
    $region38: #{resnet_block_forward.3} parent=5 // pred_check_branch
      %254 = sbr.rel (%p252) target = $region40
    $region39: #{resnet_block_forward.3} parent=5 // pred_region
      // Predicated region
      $region41: #{resnet_block_forward.3} parent=39 // pred_check
        %p255 = pneg %p34
      $region42: #{resnet_block_forward.3} parent=39 // pred_check_branch
        %257 = sbr.rel (%p255) target = $region44
      $region43: #{resnet_block_forward.3} parent=39 // pred_region
        %p258 = scmp.lt.s32.totalorder %s14, 1
        %s259 = scalar_select %p258, %s14, 1
        %s260 = smul.addr %s259, 18
        %s261 = smul.addr %s260, 4
        %s262 = scalar_lea.vmem %s0, %s261
      $region44: #{resnet_block_forward.3} parent=39 // pred_fallthru
        _
      // Predicated region
      $region45: #{resnet_block_forward.3} parent=39 // pred_check
        %p263 = pneg %p60
      $region46: #{resnet_block_forward.3} parent=39 // pred_check_branch
        %265 = sbr.rel (%p263) target = $region48
      $region47: #{resnet_block_forward.3} parent=39 // pred_region
        %p266 = scmp.lt.s32.totalorder %s14, 1
        %s267 = scalar_select %p266, %s14, 1
        %s268 = smul.addr %s267, 2
        %s269 = smul.addr %s268, 2
        %s270 = scalar_lea.vmem %s1, %s269
      $region48: #{resnet_block_forward.3} parent=39 // pred_fallthru
        _
    $region40: #{resnet_block_forward.3} parent=5 // pred_fallthru
      _
    %p271 = scmp.le.s32.totalorder 1, %s14
    %p272 = scmp.lt.s32.totalorder %s14, 3
    %p273 = pnand %p271, %p272
    %p274 = pneg %p273
    // Predicated region
    $region49: #{resnet_block_forward.3} parent=5 // pred_check
      _
    $region50: #{resnet_block_forward.3} parent=5 // pred_check_branch
      %276 = sbr.rel (%p273) target = $region52
    $region51: #{resnet_block_forward.3} parent=5 // pred_region
      %s277 = ssub.s32 %s14, 1
      %p278 = scmp.lt.s32.totalorder %s19, 1
      %s279 = scalar_select %p278, %s19, 1
      %s280 = smul.addr %s279, 18
      %s281 = smul.addr %s280, 4
      %s282 = scalar_lea.vmem %s0, %s281
      %p283 = pneg %p40
      %p284 = pneg %p37
      %p285 = scmp.lt.s32.totalorder %s19, 1
      %s286 = scalar_select %p285, %s19, 1
      %s287 = smul.addr %s286, 2
      %s288 = smul.addr %s287, 2
      %s289 = scalar_lea.vmem %s1, %s288
      %p290 = pneg %p66
      %p291 = pneg %p63
      %p292 = pneg %p87
      %p293 = pneg %p84
      %p294 = pneg %p108
      %p295 = pneg %p105
      %p296 = pneg %p129
      %p297 = pneg %p126
      %p298 = pneg %p150
      %p299 = pneg %p147
      %p300 = pneg %p171
      %p301 = pneg %p168
      %p302 = pneg %p192
      %p303 = pneg %p189
      %p304 = pneg %p218
      %p305 = pneg %p215
      %p306 = scmp.lt.s32.totalorder %s19, 1
      %s307 = scalar_select %p306, %s19, 1
      %s308 = smul.addr %s307, 2
      %s309 = smul.addr %s308, 8
      %s310 = scalar_lea.vmem %s8, %s309
      %p311 = scmp.lt.s32.totalorder %s19, 1
      %s312 = scalar_select %p311, %s19, 1
      %s313 = smul.addr %s312, 18
      %s314 = smul.addr %s313, 4
      %s315 = scalar_lea.vmem %s0, %s314
      %p316 = scmp.lt.s32.totalorder %s19, 1
      %s317 = scalar_select %p316, %s19, 1
      %s318 = smul.addr %s317, 2
      %s319 = smul.addr %s318, 2
      %s320 = scalar_lea.vmem %s1, %s319
      %p321 = scmp.lt.s32.totalorder %s19, 1
      %s322 = scalar_select %p321, %s19, 1
      %s323 = smul.addr %s322, 2
      %s324 = smul.addr %s323, 8
      %s325 = scalar_lea.vmem %s8, %s324
      %v327 = vld [vmem:[%s315] sm:$0xff]
      %v328 = vld [vmem:[%s315 + $0x8] sm:$0xff]
      %v329 = vld [vmem:[%s315 + $0x10] sm:$0xff]
      %v330 = vld [vmem:[%s315 + $0x18] sm:$0xff]
      %v331 = vld [vmem:[%s315 + $0x20] sm:$0xff]
      %v332 = vld [vmem:[%s315 + $0x28] sm:$0xff]
      %v333 = vld [vmem:[%s315 + $0x30] sm:$0xff]
      %v334 = vld [vmem:[%s315 + $0x38] sm:$0xff]
      %v335 = vld [vmem:[%s315 + $0x40] sm:$0xff]
      %v336 = vld [vmem:[%s2] sm:$0xf]
      %v337 = vld [vmem:[%s3] sm:$0xff]
      %v338 = vld [vmem:[%s4] sm:$0xff]
      %v339 = vld [vmem:[%s5] sm:$0xff]
      %341 = vset.pattern.permute.xlu0 0
      %342 = vperm.xlu0 %341, %v337
      %v343 = vpop.permute.xlu0 %342
      %v354 = vunpack.c.l.b16 %v327
      %v355 = vunpack.c.h.b16 %v327
      %v356 = vunpack.c.l.b16 %v328
      %v357 = vunpack.c.h.b16 %v328
      %v358 = vunpack.c.l.b16 %v329
      %v359 = vunpack.c.h.b16 %v329
      %v360 = vunpack.c.l.b16 %v330
      %v361 = vunpack.c.h.b16 %v330
      %v362 = vunpack.c.l.b16 %v331
      %v363 = vunpack.c.h.b16 %v331
      %v364 = vunpack.c.l.b16 %v332
      %v365 = vunpack.c.h.b16 %v332
      %v366 = vunpack.c.l.b16 %v333
      %v367 = vunpack.c.h.b16 %v333
      %v368 = vunpack.c.l.b16 %v334
      %v369 = vunpack.c.h.b16 %v334
      %v370 = vunpack.c.l.b16 %v335
      %v371 = vunpack.c.h.b16 %v335
      %v372 = vpack.c.b16 %v356, %v354
      %v373 = vpack.c.b16 %v357, %v355
      %v374 = vpack.c.b16 %v360, %v358
      %v375 = vpack.c.b16 %v361, %v359
      %v376 = vpack.c.b16 %v364, %v362
      %v377 = vpack.c.b16 %v365, %v363
      %v378 = vpack.c.b16 %v368, %v366
      %v379 = vpack.c.b16 %v369, %v367
      %v380 = vpack.c.b16 %v370, %v370
      %v381 = vpack.c.b16 %v371, %v371
      %vm390 = vcmask 588800
      %v392 = vsel %vm390, %v336, 0
      %vm394 = vcmask 1043456
      %v396 = vsel %vm394, %v380, 0
      %v399 = vsel %vm394, %v381, 0
      %401 = vmatpush.bf16.msra.mxu0 0
      %402 = vmatpush.bf16.msra.mxu0 0
      %403 = vmatpush.bf16.msra.mxu0 0
      %404 = vmatpush.bf16.msra.mxu0 %v396
      %405 = vmatpush.bf16.msra.mxu0 %v378
      %406 = vmatpush.bf16.msra.mxu0 %v376
      %407 = vmatpush.bf16.msra.mxu0 %v374
      %408 = vmatpush.bf16.msra.mxu0 %v372
      %409 = vmatmul.bf16.gmra.mxu0 %v392
      %v410 = vpop.f32.mrf.mxu0
      %v411 = vadd.f32 %v343, %v410
      %v412 = vpop.f32.mrf.mxu0
      %413 = vdwg.mxu0
      %414 = vmatpush.bf16.msra.mxu0 0
      %415 = vmatpush.bf16.msra.mxu0 0
      %416 = vmatpush.bf16.msra.mxu0 0
      %417 = vmatpush.bf16.msra.mxu0 %v399
      %418 = vmatpush.bf16.msra.mxu0 %v379
      %419 = vmatpush.bf16.msra.mxu0 %v377
      %420 = vmatpush.bf16.msra.mxu0 %v375
      %421 = vmatpush.bf16.msra.mxu0 %v373
      %422 = vmatmul.bf16.gmra.mxu0 %v392
      %v423 = vpop.f32.mrf.mxu0
      %v424 = vadd.f32 %v343, %v423
      %v425 = vpop.f32.mrf.mxu0
      %426 = vdwg.mxu0
      %v427 = vadd.f32 %v411, %v424
      %428 = vadd.xlane.f32.xlu0 %v427
      %v429 = vpop.xlane.xlu0 %428
      %v430 = vrot.slane %v429, 4
      %v431 = vadd.f32 %v429, %v430
      %v432 = vrot.slane %v431, 2
      %v433 = vadd.f32 %v431, %v432
      %v434 = vrot.slane %v433, 1
      %v435 = vadd.f32 %v433, %v434
      %s436 = vtos %v435
      %v437 = vstv %s436
      %v438 = vrcp.pop 2048.0
      %v439 = vmul.f32 2048.0, %v438
      %v440 = vsub.f32 1.0, %v439
      %v441 = vmul.f32 %v438, %v440
      %v442 = vadd.f32 %v438, %v441
      %vm443 = vweird.f32 %v438
      %v444 = vsel %vm443, %v438, %v442
      %v445 = vmul.f32 %v437, %v444
      %v446 = vsub.f32 %v411, %v445
      %v447 = vsub.f32 %v424, %v445
      %v448 = vmul.f32 %v446, %v446
      %v449 = vmul.f32 %v447, %v447
      %v450 = vadd.f32 %v448, %v449
      %451 = vadd.xlane.f32.xlu0 %v450
      %v452 = vpop.xlane.xlu0 %451
      %v453 = vrot.slane %v452, 4
      %v454 = vadd.f32 %v452, %v453
      %v455 = vrot.slane %v454, 2
      %v456 = vadd.f32 %v454, %v455
      %v457 = vrot.slane %v456, 1
      %v458 = vadd.f32 %v456, %v457
      %s459 = vtos %v458
      %v460 = vstv %s459
      %v461 = vmul.f32 %v460, %v444
      %v462 = vadd.f32 %v461, 1e-05
      %v463 = vrsqrt.pop %v462
      %v464 = vmul.f32 %v463, %v462
      %v465 = vmul.f32 %v464, %v463
      %v466 = vmul.f32 0.5, %v465
      %v467 = vsub.f32 1.5, %v466
      %v468 = vmul.f32 %v463, %v467
      %vm469 = vweird.f32 %v462
      %vm470 = vweird.f32 %v463
      %vm471 = vmor %vm469, %vm470
      %v472 = vsel %vm471, %v463, %v468
      %v473 = vmul.f32 %v446, %v472
      %v474 = vmul.f32 %v447, %v472
      %476 = vset.pattern.permute.xlu0 0
      %477 = vperm.xlu0 %476, %v338
      %v478 = vpop.permute.xlu0 %477
      %v480 = vmul.f32 %v473, %v478
      %v481 = vmul.f32 %v474, %v478
      %483 = vset.pattern.permute.xlu0 0
      %484 = vperm.xlu0 %483, %v339
      %v485 = vpop.permute.xlu0 %484
      %v487 = vadd.f32 %v480, %v485
      %v488 = vadd.f32 %v481, %v485
      %v489 = vsub.f32 0.0, %v487
      %v490 = vsub.f32 0.0, %v488
      %v491 = vmul.f32 %v489, 1.442695
      %v492 = vpow.pop %v491
      %v493 = vmul.f32 %v490, 1.442695
      %v494 = vpow.pop %v493
      %v495 = vadd.f32 %v492, 1.0
      %v496 = vadd.f32 %v494, 1.0
      %v497 = vrcp.pop %v495
      %v498 = vmul.f32 %v495, %v497
      %v499 = vsub.f32 1.0, %v498
      %v500 = vmul.f32 %v497, %v499
      %v501 = vadd.f32 %v497, %v500
      %vm502 = vweird.f32 %v495
      %vm503 = vweird.f32 %v497
      %vm504 = vmor %vm502, %vm503
      %v505 = vsel %vm504, %v497, %v501
      %v506 = vand.u32 2147483647, %v495
      %vm507 = vcmp.eq.f32.partialorder %v506, 8.507059e+37
      %v508 = vand.u32 %v495, 2147483648
      %v509 = vor.u32 1.1754944e-38, %v508
      %v510 = vsel %vm507, %v509, %v505
      %v511 = vmul.f32 1.0, %v510
      %v512 = vrcp.pop %v496
      %v513 = vmul.f32 %v496, %v512
      %v514 = vsub.f32 1.0, %v513
      %v515 = vmul.f32 %v512, %v514
      %v516 = vadd.f32 %v512, %v515
      %vm517 = vweird.f32 %v496
      %vm518 = vweird.f32 %v512
      %vm519 = vmor %vm517, %vm518
      %v520 = vsel %vm519, %v512, %v516
      %v521 = vand.u32 2147483647, %v496
      %vm522 = vcmp.eq.f32.partialorder %v521, 8.507059e+37
      %v523 = vand.u32 %v496, 2147483648
      %v524 = vor.u32 1.1754944e-38, %v523
      %v525 = vsel %vm522, %v524, %v520
      %v526 = vmul.f32 1.0, %v525
      %v527 = vmul.f32 %v487, %v511
      %v528 = vmul.f32 %v488, %v526
      %v529 = vld [vmem:[%s6] sm:$0xf]
      %v530 = vld [vmem:[%s320] sm:$0xf]
      %v531 = vld [vmem:[%s7] sm:$0xff]
      %533 = vset.pattern.permute.xlu0 0
      %534 = vperm.xlu0 %533, %v531
      %v535 = vpop.permute.xlu0 %534
      %538 = vst [vmem:[#allocation1] ss:$4 sm:$0xff] %v530
      %v539 = vld.sshfl [vmem:[#allocation1] sm:$0xff pattern:$0x73625140]
      %v540 = vld.sshfl [vmem:[#allocation1 + $0x8] sm:$0xff pattern:$0x73625140]
      %vm541 = vcmask 31744
      %v543 = vsel %vm541, %v529, 0
      %vm545 = vcmask 1041408
      %v546 = vsel %vm545, %v539, 0
      %v548 = vsel %vm545, %v540, 0
      %550 = vmatpush.bf16.msra.mxu0 0
      %551 = vmatpush.bf16.msra.mxu0 0
      %552 = vmatpush.bf16.msra.mxu0 0
      %553 = vmatpush.bf16.msra.mxu0 0
      %554 = vmatpush.bf16.msra.mxu0 0
      %555 = vmatpush.bf16.msra.mxu0 0
      %556 = vmatpush.bf16.msra.mxu0 0
      %557 = vmatpush.bf16.msra.mxu0 %v546
      %558 = vmatmul.bf16.gmra.mxu0 %v543
      %v559 = vpop.f32.mrf.mxu0
      %v560 = vadd.f32 %v535, %v559
      %v561 = vpop.f32.mrf.mxu0
      %562 = vdwg.mxu0
      %563 = vmatpush.bf16.msra.mxu0 0
      %564 = vmatpush.bf16.msra.mxu0 0
      %565 = vmatpush.bf16.msra.mxu0 0
      %566 = vmatpush.bf16.msra.mxu0 0
      %567 = vmatpush.bf16.msra.mxu0 0
      %568 = vmatpush.bf16.msra.mxu0 0
      %569 = vmatpush.bf16.msra.mxu0 0
      %570 = vmatpush.bf16.msra.mxu0 %v548
      %571 = vmatmul.bf16.gmra.mxu0 %v543
      %v572 = vpop.f32.mrf.mxu0
      %v573 = vadd.f32 %v535, %v572
      %v574 = vpop.f32.mrf.mxu0
      %575 = vdwg.mxu0
      %v576 = vadd.f32 %v527, %v560
      %v577 = vadd.f32 %v528, %v573
      %578 = vst [vmem:[%s325] sm:$0xff] %v576
      %579 = vst [vmem:[%s325 + $0x8] sm:$0xff] %v577
      %p580 = scmp.lt.s32.totalorder %s19, 1
      %s581 = scalar_select %p580, %s19, 1
      %s582 = smul.addr %s581, 2
      %s583 = smul.addr %s582, 8
      %s584 = scalar_lea.vmem %s8, %s583
      // Predicated region
      $region53: #{resnet_block_forward.3} parent=51 // pred_check
        %p585 = pneg %p215
      $region54: #{resnet_block_forward.3} parent=51 // pred_check_branch
        %587 = sbr.rel (%p585) target = $region56
      $region55: #{resnet_block_forward.3} parent=51 // pred_region
        _
      $region56: #{resnet_block_forward.3} parent=51 // pred_fallthru
        _
    $region52: #{resnet_block_forward.3} parent=5 // pred_fallthru
      _
    %p588 = scmp.le.s32.totalorder 2, %s14
    // Predicated region
    $region57: #{resnet_block_forward.3} parent=5 // pred_check
      %p589 = pneg %p588
    $region58: #{resnet_block_forward.3} parent=5 // pred_check_branch
      %591 = sbr.rel (%p589) target = $region60
    $region59: #{resnet_block_forward.3} parent=5 // pred_region
      %s592 = ssub.s32 %s14, 2
      // Predicated region
      $region61: #{resnet_block_forward.3} parent=59 // pred_check
        %p593 = pneg %p221
      $region62: #{resnet_block_forward.3} parent=59 // pred_check_branch
        %595 = sbr.rel (%p593) target = $region64
      $region63: #{resnet_block_forward.3} parent=59 // pred_region
        %p596 = scmp.lt.s32.totalorder %s20, 1
        %s597 = scalar_select %p596, %s20, 1
        %s598 = smul.addr %s597, 2
        %s599 = smul.addr %s598, 8
        %s600 = scalar_lea.vmem %s8, %s599
      $region64: #{resnet_block_forward.3} parent=59 // pred_fallthru
        _
    $region60: #{resnet_block_forward.3} parent=5 // pred_fallthru
      _
  $region6: #{resnet_block_forward.3} parent=0 // loop_footer
    %s18 = sadd.s32 1, %s14
  $region7: #{resnet_block_forward.3} parent=0 // loop_footer_branch
    %13 = sbr.rel target = $region3
  $region8: #{resnet_block_forward.3} parent=0 // loop_exit
    _

</llo_original>
